<compile_context>
chip_gen: v5e
topology: v5e:2x2
jax: 0.10.0
libtpu: 0.0.40
codegen_flags: <defaults>
</compile_context>

<pallas_src>
import functools

import jax
import jax.numpy as jnp
from jax.experimental import pallas as pl
from jax.experimental.pallas import tpu as pltpu


# Set True on TPU v7x (2 TensorCores/chip): only CORE_PARALLEL splits the batch grid axis
# across TensorCores; plain "parallel" is a no-op for codegen.
USE_CORE_PARALLEL_V7X = False


# ----------------------------------------------------------------------------- kernel


def fused_edgeface_kernel(
    x_ref,      # (Bblk*T, K) bf16   patchified pixels for Bblk images
    ws_ref,     # (K, D)      bf16   stem conv weight (as matmul)
    dvec_ref,   # (6, D)      f32    [b_stem; gamma; beta; b2; head_gamma; head_beta]
    w1_ref,     # (D, Hm)     bf16   MLP expand weight
    b1_ref,     # (1, Hm)     f32
    w2_ref,     # (Hm, D)     bf16   MLP project weight
    wh_ref,     # (D, F)      f32    classifier head weight (f32: keep pooled path un-quantised)
    bh_ref,     # (1, F)      f32
    o_ref,      # (Bblk, F)   f32    per-image embeddings (lane-dense, F = 512)
    *,
    tokens_per_image,
):
    T = tokens_per_image
    n_rows = x_ref.shape[0]
    bblk = n_rows // T

    dvec = dvec_ref[...]
    b_stem = dvec[0:1, :]
    gamma = dvec[1:2, :]
    beta = dvec[2:3, :]
    b2 = dvec[3:4, :]
    head_gamma = dvec[4:5, :]
    head_beta = dvec[5:6, :]

    # --- stem: 4x4/s4 patch-embed conv as one big matmul (bf16 MXU, f32 accumulate) ---
    tokens = (
        jnp.dot(x_ref[...], ws_ref[...], preferred_element_type=jnp.float32) + b_stem
    )                                                   # [Bblk*T, D] f32

    # --- ConvNeXt/EdgeNeXt block: LN (one-pass stats) -> Linear -> GELU -> Linear -> res ---
    mu = jnp.mean(tokens, axis=-1, keepdims=True)
    ex2 = jnp.mean(tokens * tokens, axis=-1, keepdims=True)
    var = ex2 - mu * mu
    xn = (tokens - mu) * jax.lax.rsqrt(var + 1e-6)
    xn = xn * gamma + beta

    h = (
        jnp.dot(xn.astype(jnp.bfloat16), w1_ref[...],
                preferred_element_type=jnp.float32)
        + b1_ref[...]
    )                                                   # [Bblk*T, Hm] f32
    h = jax.nn.gelu(h, approximate=True)                # tanh GELU -> EUP slot

    y = (
        jnp.dot(h.astype(jnp.bfloat16), w2_ref[...],
                preferred_element_type=jnp.float32)
        + b2
    )                                                   # [Bblk*T, D] f32
    tokens = tokens + y                                 # residual, stays in VMEM

    # --- per-image global average pool as a block-diagonal averaging matmul (MXU) ---
    row_ids = jax.lax.broadcasted_iota(jnp.int32, (bblk, n_rows), 0)
    col_ids = jax.lax.broadcasted_iota(jnp.int32, (bblk, n_rows), 1)
    lower = row_ids * T
    pool_mat = jnp.where(
        (col_ids >= lower) & (col_ids < lower + T),
        jnp.float32(1.0 / T),
        jnp.float32(0.0),
    )                                                   # [Bblk, Bblk*T] f32
    pooled = jnp.dot(pool_mat, tokens, preferred_element_type=jnp.float32)  # [Bblk, D] f32

    # --- head: LayerNorm on pooled features + Linear(D, F) from reset_classifier(512) ---
    pmu = jnp.mean(pooled, axis=-1, keepdims=True)
    pex2 = jnp.mean(pooled * pooled, axis=-1, keepdims=True)
    pn = (pooled - pmu) * jax.lax.rsqrt(pex2 - pmu * pmu + 1e-6)
    pn = pn * head_gamma + head_beta

    out = jnp.dot(pn, wh_ref[...], preferred_element_type=jnp.float32) + bh_ref[...]
    o_ref[...] = out                                    # [Bblk, F] f32, F = 512 lane-dense


# ----------------------------------------------------------------------------- wrapper


def _pick_block_images(batch):
    """Images per grid step: multiple of 8 when possible (sublane-dense output stores),
    otherwise the whole batch (block == full dim is always layout-legal)."""
    if batch % 8 == 0:
        return 8
    return batch


def fused_forward(x_rows, ws, dvec, w1, b1, w2, wh, bh, *, tokens_per_image, block_images):
    """x_rows: [B*T, K] bf16 patch rows; returns [B, F] f32 embeddings."""
    n_rows, K = x_rows.shape
    T = tokens_per_image
    B = n_rows // T
    Bblk = block_images
    assert B % Bblk == 0, (B, Bblk)
    assert (Bblk * T) % 8 == 0, "per-step row count must be sublane aligned"
    D = ws.shape[1]
    Hm = w1.shape[1]
    F = wh.shape[1]

    rows_per_step = Bblk * T

    def const_spec(shape):
        # Constant index_map -> never re-fetched; single-buffer to avoid a 2nd VMEM copy.
        return pl.BlockSpec(
            shape,
            lambda b: (0,) * len(shape),
            pipeline_mode=pl.Buffered(1),
        )

    # --- advisory cost estimate (full batch) ---
    flops = B * T * (2 * K * D + 2 * D * Hm + 2 * Hm * D + 2 * D) + B * (2 * D * F)
    transcendentals = B * T * (Hm + 1) + B          # tanh GELU + rsqrt
    bytes_accessed = (
        x_rows.size * 2
        + (ws.size + w1.size + w2.size) * 2
        + (wh.size + dvec.size + b1.size + bh.size) * 4
        + B * F * 4
    )

    # --- explicit VMEM budget (review: don't rely on the default scoped limit when scaling;
    # v7x has 64 MiB physical vs 128 MiB on v5e/v6e) ---
    x_block_bytes = rows_per_step * K * 2
    out_block_bytes = Bblk * F * 4
    weight_bytes = (ws.size + w1.size + w2.size) * 2 + (wh.size + dvec.size + b1.size + bh.size) * 4
    act_bytes = rows_per_step * (2 * D + Hm) * 4
    working_set = 2 * (x_block_bytes + out_block_bytes) + weight_bytes + act_bytes
    vmem_limit = min(max(4 * working_set, 16 * 1024 * 1024), 64 * 1024 * 1024)

    batch_sem = pltpu.CORE_PARALLEL if USE_CORE_PARALLEL_V7X else "parallel"

    out = pl.pallas_call(
        functools.partial(fused_edgeface_kernel, tokens_per_image=T),
        out_shape=jax.ShapeDtypeStruct((B, F), jnp.float32),
        grid=(B // Bblk,),
        in_specs=[
            pl.BlockSpec((rows_per_step, K), lambda b: (b, 0)),   # per-step patch rows
            const_spec((K, D)),
            const_spec((6, D)),
            const_spec((D, Hm)),
            const_spec((1, Hm)),
            const_spec((Hm, D)),
            const_spec((D, F)),
            const_spec((1, F)),
        ],
        out_specs=pl.BlockSpec((Bblk, F), lambda b: (b, 0)),
        compiler_params=pltpu.CompilerParams(
            dimension_semantics=(batch_sem,),
            vmem_limit_bytes=vmem_limit,
        ),
        cost_estimate=pl.CostEstimate(
            flops=flops,
            transcendentals=transcendentals,
            bytes_accessed=bytes_accessed,
        ),
    )(x_rows, ws, dvec, w1, b1, w2, wh, bh)
    return out


# ----------------------------------------------------------------------------- model


def init_params(key, c_in=4, dim=32, mlp_ratio=4, featdim=512, patch=4):
    k = jax.random.split(key, 6)
    k_dim = patch * patch * c_in
    params = {
        "w_stem": jax.random.normal(k[0], (k_dim, dim), jnp.float32) * 0.02,
        "b_stem": jnp.zeros((1, dim), jnp.float32),
        "gamma": jnp.ones((1, dim), jnp.float32),
        "beta": jnp.zeros((1, dim), jnp.float32),
        "w1": jax.random.normal(k[1], (dim, dim * mlp_ratio), jnp.float32) * 0.02,
        "b1": jnp.zeros((1, dim * mlp_ratio), jnp.float32),
        "w2": jax.random.normal(k[2], (dim * mlp_ratio, dim), jnp.float32) * 0.02,
        "b2": jnp.zeros((1, dim), jnp.float32),
        "head_gamma": jnp.ones((1, dim), jnp.float32),
        "head_beta": jnp.zeros((1, dim), jnp.float32),
        "w_head": jax.random.normal(k[3], (dim, featdim), jnp.float32) * 0.02,
        "b_head": jnp.zeros((1, featdim), jnp.float32),
    }
    return params


@functools.partial(jax.jit, static_argnames=("patch",))
def timm_fr_wrapper_v2_forward(x_nchw, params, patch=4):
    """Forward pass of TimmFRWrapperV2 (simplified edgenext backbone + 512-dim head).

    x_nchw: [B, C, H, W] float32 (PyTorch convention).  Returns [B, 512] float32.
    """
    B, C, H, W = x_nchw.shape
    Hp, Wp = H // patch, W // patch
    T = Hp * Wp

    # NCHW -> NHWC -> patchified [B*T, K]; see TODO about folding this into the kernel.
    x = jnp.transpose(x_nchw, (0, 2, 3, 1))
    x = x.reshape(B, Hp, patch, Wp, patch, C)
    x = jnp.transpose(x, (0, 1, 3, 2, 4, 5)).reshape(B * T, patch * patch * C)
    x_bf16 = x.astype(jnp.bfloat16)

    # bf16 MXU operands for the big matmuls (f32 accumulation inside the kernel);
    # head weight stays f32 so the pooled feature path is never quantised.
    ws = params["w_stem"].astype(jnp.bfloat16)
    w1 = params["w1"].astype(jnp.bfloat16)
    w2 = params["w2"].astype(jnp.bfloat16)
    wh = params["w_head"]

    # pack the six (1, D) vectors into a single operand (fewer DMA descriptors)
    dvec = jnp.concatenate(
        [params["b_stem"], params["gamma"], params["beta"], params["b2"],
         params["head_gamma"], params["head_beta"]],
        axis=0,
    )  # [6, D] f32

    return fused_forward(
        x_bf16, ws, dvec, w1, params["b1"], w2, wh, params["b_head"],
        tokens_per_image=T,
        block_images=_pick_block_images(B),
    )


# ----------------------------------------------------------------------------- main

if __name__ == "__main__":
    key = jax.random.PRNGKey(0)
    k_x, k_p = jax.random.split(key)

    B, C, H, W = 2, 4, 16, 16
    x = jax.random.normal(k_x, (B, C, H, W), jnp.float32)

    params = init_params(k_p, c_in=C, dim=32, mlp_ratio=4, featdim=512, patch=4)

    out = timm_fr_wrapper_v2_forward(x, params)
    out = jax.block_until_ready(out)

    assert out.shape == (B, 512), out.shape
    assert out.dtype == jnp.float32
    print("KERNEL_OK")
</pallas_src>

<mosaic_0001>
module attributes {stable_mosaic.version = 11 : i64} {
  func.func @fused_edgeface_kernel(%arg0: i32, %arg1: memref<32x64xbf16, #tpu.memory_space<vmem>>, %arg2: memref<64x32xbf16, #tpu.memory_space<vmem>>, %arg3: memref<6x32xf32, #tpu.memory_space<vmem>>, %arg4: memref<32x128xbf16, #tpu.memory_space<vmem>>, %arg5: memref<1x128xf32, #tpu.memory_space<vmem>>, %arg6: memref<128x32xbf16, #tpu.memory_space<vmem>>, %arg7: memref<32x512xf32, #tpu.memory_space<vmem>>, %arg8: memref<1x512xf32, #tpu.memory_space<vmem>>, %arg9: memref<2x512xf32, #tpu.memory_space<vmem>>) attributes {dimension_semantics = [#tpu.dimension_semantics<parallel>], iteration_bounds = array<i64: 1>, scalar_prefetch = 0 : i64, scratch_operands = 0 : i64, tpu.core_type = #tpu.core_type<tc>, window_params = [{transform_indices = @transform_0, window_bounds = array<i64: 32, 64>}, {pipeline_mode = #tpu.pipeline_mode<synchronous>, transform_indices = @transform_1, window_bounds = array<i64: 64, 32>}, {pipeline_mode = #tpu.pipeline_mode<synchronous>, transform_indices = @transform_2, window_bounds = array<i64: 6, 32>}, {pipeline_mode = #tpu.pipeline_mode<synchronous>, transform_indices = @transform_3, window_bounds = array<i64: 32, 128>}, {pipeline_mode = #tpu.pipeline_mode<synchronous>, transform_indices = @transform_4, window_bounds = array<i64: 1, 128>}, {pipeline_mode = #tpu.pipeline_mode<synchronous>, transform_indices = @transform_5, window_bounds = array<i64: 128, 32>}, {pipeline_mode = #tpu.pipeline_mode<synchronous>, transform_indices = @transform_6, window_bounds = array<i64: 32, 512>}, {pipeline_mode = #tpu.pipeline_mode<synchronous>, transform_indices = @transform_7, window_bounds = array<i64: 1, 512>}, {transform_indices = @transform_8, window_bounds = array<i64: 2, 512>}]} {
    %c0 = arith.constant 0 : index
    %c0_0 = arith.constant 0 : index
    %0 = vector.load %arg3[%c0, %c0_0] : memref<6x32xf32, #tpu.memory_space<vmem>>, vector<6x32xf32>
    %1 = vector.extract_strided_slice %0 {offsets = [0, 0], sizes = [1, 32], strides = [1, 1]} : vector<6x32xf32> to vector<1x32xf32>
    %2 = vector.extract_strided_slice %0 {offsets = [1, 0], sizes = [1, 32], strides = [1, 1]} : vector<6x32xf32> to vector<1x32xf32>
    %3 = vector.extract_strided_slice %0 {offsets = [2, 0], sizes = [1, 32], strides = [1, 1]} : vector<6x32xf32> to vector<1x32xf32>
    %4 = vector.extract_strided_slice %0 {offsets = [3, 0], sizes = [1, 32], strides = [1, 1]} : vector<6x32xf32> to vector<1x32xf32>
    %5 = vector.extract_strided_slice %0 {offsets = [4, 0], sizes = [1, 32], strides = [1, 1]} : vector<6x32xf32> to vector<1x32xf32>
    %6 = vector.extract_strided_slice %0 {offsets = [5, 0], sizes = [1, 32], strides = [1, 1]} : vector<6x32xf32> to vector<1x32xf32>
    %c0_1 = arith.constant 0 : index
    %c0_2 = arith.constant 0 : index
    %7 = vector.load %arg1[%c0_1, %c0_2] : memref<32x64xbf16, #tpu.memory_space<vmem>>, vector<32x64xbf16>
    %c0_3 = arith.constant 0 : index
    %c0_4 = arith.constant 0 : index
    %8 = vector.load %arg2[%c0_3, %c0_4] : memref<64x32xbf16, #tpu.memory_space<vmem>>, vector<64x32xbf16>
    %cst = arith.constant dense<0.000000e+00> : vector<32x32xf32>
    %9 = tpu.matmul %7, %8, %cst {dimension_numbers = #tpu.dot_dimension_numbers<[1], [0], [0], [1], [0, 0, 1, 1], [], []>} : vector<32x64xbf16>, vector<64x32xbf16>, vector<32x32xf32> -> vector<32x32xf32>
    %10 = vector.broadcast %1 : vector<1x32xf32> to vector<32x32xf32>
    %11 = arith.addf %9, %10 : vector<32x32xf32>
    %cst_5 = arith.constant dense<0.000000e+00> : vector<32xf32>
    %12 = vector.multi_reduction <add>, %11, %cst_5 [1] : vector<32x32xf32> to vector<32xf32>
    %13 = vector.shape_cast %12 : vector<32xf32> to vector<32x1xf32>
    %cst_6 = arith.constant 3.200000e+01 : f32
    %14 = vector.broadcast %cst_6 : f32 to vector<32x1xf32>
    %15 = arith.divf %13, %14 : vector<32x1xf32>
    %16 = arith.mulf %11, %11 : vector<32x32xf32>
    %cst_7 = arith.constant dense<0.000000e+00> : vector<32xf32>
    %17 = vector.multi_reduction <add>, %16, %cst_7 [1] : vector<32x32xf32> to vector<32xf32>
    %18 = vector.shape_cast %17 : vector<32xf32> to vector<32x1xf32>
    %cst_8 = arith.constant 3.200000e+01 : f32
    %19 = vector.broadcast %cst_8 : f32 to vector<32x1xf32>
    %20 = arith.divf %18, %19 : vector<32x1xf32>
    %21 = arith.mulf %15, %15 : vector<32x1xf32>
    %22 = arith.subf %20, %21 : vector<32x1xf32>
    %23 = vector.broadcast %15 : vector<32x1xf32> to vector<32x32xf32>
    %24 = arith.subf %11, %23 : vector<32x32xf32>
    %cst_9 = arith.constant 9.99999997E-7 : f32
    %25 = vector.broadcast %cst_9 : f32 to vector<32x1xf32>
    %26 = arith.addf %22, %25 : vector<32x1xf32>
    %27 = math.rsqrt %26 : vector<32x1xf32>
    %28 = vector.broadcast %27 : vector<32x1xf32> to vector<32x32xf32>
    %29 = arith.mulf %24, %28 : vector<32x32xf32>
    %30 = vector.broadcast %2 : vector<1x32xf32> to vector<32x32xf32>
    %31 = arith.mulf %29, %30 : vector<32x32xf32>
    %32 = vector.broadcast %3 : vector<1x32xf32> to vector<32x32xf32>
    %33 = arith.addf %31, %32 : vector<32x32xf32>
    %34 = arith.truncf %33 : vector<32x32xf32> to vector<32x32xbf16>
    %c0_10 = arith.constant 0 : index
    %c0_11 = arith.constant 0 : index
    %35 = vector.load %arg4[%c0_10, %c0_11] : memref<32x128xbf16, #tpu.memory_space<vmem>>, vector<32x128xbf16>
    %cst_12 = arith.constant dense<0.000000e+00> : vector<32x128xf32>
    %36 = tpu.matmul %34, %35, %cst_12 {dimension_numbers = #tpu.dot_dimension_numbers<[1], [0], [0], [1], [0, 0, 1, 1], [], []>} : vector<32x32xbf16>, vector<32x128xbf16>, vector<32x128xf32> -> vector<32x128xf32>
    %c0_13 = arith.constant 0 : index
    %c0_14 = arith.constant 0 : index
    %37 = vector.load %arg5[%c0_13, %c0_14] : memref<1x128xf32, #tpu.memory_space<vmem>>, vector<1x128xf32>
    %38 = vector.broadcast %37 : vector<1x128xf32> to vector<32x128xf32>
    %39 = arith.addf %36, %38 : vector<32x128xf32>
    %40 = arith.mulf %39, %39 : vector<32x128xf32>
    %41 = arith.mulf %39, %40 : vector<32x128xf32>
    %cst_15 = arith.constant 4.471500e-02 : f32
    %42 = vector.broadcast %cst_15 : f32 to vector<32x128xf32>
    %43 = arith.mulf %42, %41 : vector<32x128xf32>
    %44 = arith.addf %39, %43 : vector<32x128xf32>
    %cst_16 = arith.constant 0.797884583 : f32
    %45 = vector.broadcast %cst_16 : f32 to vector<32x128xf32>
    %46 = arith.mulf %45, %44 : vector<32x128xf32>
    %47 = math.tanh %46 : vector<32x128xf32>
    %cst_17 = arith.constant 1.000000e+00 : f32
    %48 = vector.broadcast %cst_17 : f32 to vector<32x128xf32>
    %49 = arith.addf %48, %47 : vector<32x128xf32>
    %cst_18 = arith.constant 5.000000e-01 : f32
    %50 = vector.broadcast %cst_18 : f32 to vector<32x128xf32>
    %51 = arith.mulf %50, %49 : vector<32x128xf32>
    %52 = arith.mulf %39, %51 : vector<32x128xf32>
    %53 = arith.truncf %52 : vector<32x128xf32> to vector<32x128xbf16>
    %c0_19 = arith.constant 0 : index
    %c0_20 = arith.constant 0 : index
    %54 = vector.load %arg6[%c0_19, %c0_20] : memref<128x32xbf16, #tpu.memory_space<vmem>>, vector<128x32xbf16>
    %cst_21 = arith.constant dense<0.000000e+00> : vector<32x32xf32>
    %55 = tpu.matmul %53, %54, %cst_21 {dimension_numbers = #tpu.dot_dimension_numbers<[1], [0], [0], [1], [0, 0, 1, 1], [], []>} : vector<32x128xbf16>, vector<128x32xbf16>, vector<32x32xf32> -> vector<32x32xf32>
    %56 = vector.broadcast %4 : vector<1x32xf32> to vector<32x32xf32>
    %57 = arith.addf %55, %56 : vector<32x32xf32>
    %58 = arith.addf %11, %57 : vector<32x32xf32>
    %59 = tpu.iota {dimensions = array<i32: 0>} : vector<2x32xi32>
    %60 = tpu.iota {dimensions = array<i32: 1>} : vector<2x32xi32>
    %c16_i32 = arith.constant 16 : i32
    %61 = vector.broadcast %c16_i32 : i32 to vector<2x32xi32>
    %62 = arith.muli %59, %61 : vector<2x32xi32>
    %63 = arith.cmpi sge, %60, %62 : vector<2x32xi32>
    %c16_i32_22 = arith.constant 16 : i32
    %64 = vector.broadcast %c16_i32_22 : i32 to vector<2x32xi32>
    %65 = arith.addi %62, %64 : vector<2x32xi32>
    %66 = arith.cmpi slt, %60, %65 : vector<2x32xi32>
    %67 = arith.andi %63, %66 : vector<2x32xi1>
    %cst_23 = arith.constant 6.250000e-02 : f32
    %cst_24 = arith.constant 0.000000e+00 : f32
    %68 = vector.broadcast %cst_23 : f32 to vector<2x32xf32>
    %69 = vector.broadcast %cst_24 : f32 to vector<2x32xf32>
    %70 = arith.select %67, %68, %69 : vector<2x32xi1>, vector<2x32xf32>
    %cst_25 = arith.constant dense<0.000000e+00> : vector<2x32xf32>
    %71 = tpu.matmul %70, %58, %cst_25 {dimension_numbers = #tpu.dot_dimension_numbers<[1], [0], [0], [1], [0, 0, 1, 1], [], []>} : vector<2x32xf32>, vector<32x32xf32>, vector<2x32xf32> -> vector<2x32xf32>
    %cst_26 = arith.constant dense<0.000000e+00> : vector<2xf32>
    %72 = vector.multi_reduction <add>, %71, %cst_26 [1] : vector<2x32xf32> to vector<2xf32>
    %73 = vector.shape_cast %72 : vector<2xf32> to vector<2x1xf32>
    %cst_27 = arith.constant 3.200000e+01 : f32
    %74 = vector.broadcast %cst_27 : f32 to vector<2x1xf32>
    %75 = arith.divf %73, %74 : vector<2x1xf32>
    %76 = arith.mulf %71, %71 : vector<2x32xf32>
    %cst_28 = arith.constant dense<0.000000e+00> : vector<2xf32>
    %77 = vector.multi_reduction <add>, %76, %cst_28 [1] : vector<2x32xf32> to vector<2xf32>
    %78 = vector.shape_cast %77 : vector<2xf32> to vector<2x1xf32>
    %cst_29 = arith.constant 3.200000e+01 : f32
    %79 = vector.broadcast %cst_29 : f32 to vector<2x1xf32>
    %80 = arith.divf %78, %79 : vector<2x1xf32>
    %81 = vector.broadcast %75 : vector<2x1xf32> to vector<2x32xf32>
    %82 = arith.subf %71, %81 : vector<2x32xf32>
    %83 = arith.mulf %75, %75 : vector<2x1xf32>
    %84 = arith.subf %80, %83 : vector<2x1xf32>
    %cst_30 = arith.constant 9.99999997E-7 : f32
    %85 = vector.broadcast %cst_30 : f32 to vector<2x1xf32>
    %86 = arith.addf %84, %85 : vector<2x1xf32>
    %87 = math.rsqrt %86 : vector<2x1xf32>
    %88 = vector.broadcast %87 : vector<2x1xf32> to vector<2x32xf32>
    %89 = arith.mulf %82, %88 : vector<2x32xf32>
    %90 = vector.broadcast %5 : vector<1x32xf32> to vector<2x32xf32>
    %91 = arith.mulf %89, %90 : vector<2x32xf32>
    %92 = vector.broadcast %6 : vector<1x32xf32> to vector<2x32xf32>
    %93 = arith.addf %91, %92 : vector<2x32xf32>
    %c0_31 = arith.constant 0 : index
    %c0_32 = arith.constant 0 : index
    %94 = vector.load %arg7[%c0_31, %c0_32] : memref<32x512xf32, #tpu.memory_space<vmem>>, vector<32x512xf32>
    %cst_33 = arith.constant dense<0.000000e+00> : vector<2x512xf32>
    %95 = tpu.matmul %93, %94, %cst_33 {dimension_numbers = #tpu.dot_dimension_numbers<[1], [0], [0], [1], [0, 0, 1, 1], [], []>} : vector<2x32xf32>, vector<32x512xf32>, vector<2x512xf32> -> vector<2x512xf32>
    %c0_34 = arith.constant 0 : index
    %c0_35 = arith.constant 0 : index
    %96 = vector.load %arg8[%c0_34, %c0_35] : memref<1x512xf32, #tpu.memory_space<vmem>>, vector<1x512xf32>
    %97 = vector.broadcast %96 : vector<1x512xf32> to vector<2x512xf32>
    %98 = arith.addf %95, %97 : vector<2x512xf32>
    %c0_36 = arith.constant 0 : index
    %c0_37 = arith.constant 0 : index
    %99 = vector.load %arg9[%c0_36, %c0_37] : memref<2x512xf32, #tpu.memory_space<vmem>>, vector<2x512xf32>
    tpu.vector_store %arg9[%c0_36, %c0_37], %98 {strides = array<i32>} : memref<2x512xf32, #tpu.memory_space<vmem>>, vector<2x512xf32>,
    return
  }
  func.func @transform_0(%arg0: i32) -> (i32, i32) {
    %c0_i32 = arith.constant 0 : i32
    %c0_i32_0 = arith.constant 0 : i32
    return %arg0, %c0_i32 : i32, i32
  }
  func.func @transform_1(%arg0: i32) -> (i32, i32) {
    %c0_i32 = arith.constant 0 : i32
    %c0_i32_0 = arith.constant 0 : i32
    %c0_i32_1 = arith.constant 0 : i32
    return %c0_i32, %c0_i32_0 : i32, i32
  }
  func.func @transform_2(%arg0: i32) -> (i32, i32) {
    %c0_i32 = arith.constant 0 : i32
    %c0_i32_0 = arith.constant 0 : i32
    %c0_i32_1 = arith.constant 0 : i32
    return %c0_i32, %c0_i32_0 : i32, i32
  }
  func.func @transform_3(%arg0: i32) -> (i32, i32) {
    %c0_i32 = arith.constant 0 : i32
    %c0_i32_0 = arith.constant 0 : i32
    %c0_i32_1 = arith.constant 0 : i32
    return %c0_i32, %c0_i32_0 : i32, i32
  }
  func.func @transform_4(%arg0: i32) -> (i32, i32) {
    %c0_i32 = arith.constant 0 : i32
    %c0_i32_0 = arith.constant 0 : i32
    %c0_i32_1 = arith.constant 0 : i32
    return %c0_i32, %c0_i32_0 : i32, i32
  }
  func.func @transform_5(%arg0: i32) -> (i32, i32) {
    %c0_i32 = arith.constant 0 : i32
    %c0_i32_0 = arith.constant 0 : i32
    %c0_i32_1 = arith.constant 0 : i32
    return %c0_i32, %c0_i32_0 : i32, i32
  }
  func.func @transform_6(%arg0: i32) -> (i32, i32) {
    %c0_i32 = arith.constant 0 : i32
    %c0_i32_0 = arith.constant 0 : i32
    %c0_i32_1 = arith.constant 0 : i32
    return %c0_i32, %c0_i32_0 : i32, i32
  }
  func.func @transform_7(%arg0: i32) -> (i32, i32) {
    %c0_i32 = arith.constant 0 : i32
    %c0_i32_0 = arith.constant 0 : i32
    %c0_i32_1 = arith.constant 0 : i32
    return %c0_i32, %c0_i32_0 : i32, i32
  }
  func.func @transform_8(%arg0: i32) -> (i32, i32) {
    %c0_i32 = arith.constant 0 : i32
    %c0_i32_0 = arith.constant 0 : i32
    return %arg0, %c0_i32 : i32, i32
  }
}

</mosaic_0001>

<llo_original>
// kernel: timm_fr_wrapper_v2_forward.1
$region0: #{timm_fr_wrapper_v2_forward.1}
  #allocation0 [shape = 'u32[]', space=smem, size = 0x4, offset = 0x4, fixed_abs, tag = 'smem constant byte address 0x4 - core index']
  #allocation1 [shape = 'u32[72,128]{1,0:T(1,128)}', space=vmem, size = 0x9000, scoped, tag = 'internal scratch']
  %s0 = inlined_call_operand.vmem [shape: bf16[32,64], index: 0, kind: input, shape index: {}]
  %s1 = inlined_call_operand.vmem [shape: bf16[64,32], index: 1, kind: input, shape index: {}]
  %s2 = inlined_call_operand.vmem [shape: f32[6,32], index: 2, kind: input, shape index: {}]
  %s3 = inlined_call_operand.vmem [shape: bf16[32,128], index: 3, kind: input, shape index: {}]
  %s4 = inlined_call_operand.vmem [shape: f32[1,128], index: 4, kind: input, shape index: {}]
  %s5 = inlined_call_operand.vmem [shape: bf16[128,32], index: 5, kind: input, shape index: {}]
  %s6 = inlined_call_operand.vmem [shape: f32[32,512], index: 6, kind: input, shape index: {}]
  %s7 = inlined_call_operand.vmem [shape: f32[1,512], index: 7, kind: input, shape index: {}]
  %s8 = inlined_call_operand.hbm [shape: f32[2,512], index: 8, kind: output, shape index: {}]
  %s9 = sld [smem:[#allocation0]]
  $region42: #{timm_fr_wrapper_v2_forward.1} parent=0
    _
  %s11 = ssub.s32 1, %s9
  %s12 = scalar_select 0, %s11, %s9
  $region1: #{timm_fr_wrapper_v2_forward.1} parent=0
    #allocation2 [shape = 'u8[4096]{0}', space=vmem, size = 0x1000, scoped, tag = 'output window, operand 0, single buffered']
    #allocation3 [shape = 's32[1]{0}', space=sflag, size = 0x4, scoped, tag = 'scoped memory for timm_fr_wrapper_v2_forward.1']
    %13 = vsyncpa [#allocation3], 0
    // Predicated region
    $region2: #{timm_fr_wrapper_v2_forward.1} parent=1 // pred_check
      _
    $region3: #{timm_fr_wrapper_v2_forward.1} parent=1 // pred_check_branch
      %15 = sbr.rel (0) target = $region5
    $region4: #{timm_fr_wrapper_v2_forward.1} parent=1 // pred_region
      _
    $region5: #{timm_fr_wrapper_v2_forward.1} parent=1 // pred_fallthru
      _
    // Predicated region
    $region6: #{timm_fr_wrapper_v2_forward.1} parent=1 // pred_check
      _
    $region7: #{timm_fr_wrapper_v2_forward.1} parent=1 // pred_check_branch
      %17 = sbr.rel (0) target = $region9
    $region8: #{timm_fr_wrapper_v2_forward.1} parent=1 // pred_region
      _
    $region9: #{timm_fr_wrapper_v2_forward.1} parent=1 // pred_fallthru
      _
    // Predicated region
    $region10: #{timm_fr_wrapper_v2_forward.1} parent=1 // pred_check
      _
    $region11: #{timm_fr_wrapper_v2_forward.1} parent=1 // pred_check_branch
      %19 = sbr.rel (0) target = $region13
    $region12: #{timm_fr_wrapper_v2_forward.1} parent=1 // pred_region
      _
    $region13: #{timm_fr_wrapper_v2_forward.1} parent=1 // pred_fallthru
      _
    // Predicated region
    $region14: #{timm_fr_wrapper_v2_forward.1} parent=1 // pred_check
      _
    $region15: #{timm_fr_wrapper_v2_forward.1} parent=1 // pred_check_branch
      %21 = sbr.rel (0) target = $region17
    $region16: #{timm_fr_wrapper_v2_forward.1} parent=1 // pred_region
      _
    $region17: #{timm_fr_wrapper_v2_forward.1} parent=1 // pred_fallthru
      _
    // Predicated region
    $region18: #{timm_fr_wrapper_v2_forward.1} parent=1 // pred_check
      _
    $region19: #{timm_fr_wrapper_v2_forward.1} parent=1 // pred_check_branch
      %23 = sbr.rel (0) target = $region21
    $region20: #{timm_fr_wrapper_v2_forward.1} parent=1 // pred_region
      _
    $region21: #{timm_fr_wrapper_v2_forward.1} parent=1 // pred_fallthru
      _
    // Predicated region
    $region22: #{timm_fr_wrapper_v2_forward.1} parent=1 // pred_check
      _
    $region23: #{timm_fr_wrapper_v2_forward.1} parent=1 // pred_check_branch
      %25 = sbr.rel (0) target = $region25
    $region24: #{timm_fr_wrapper_v2_forward.1} parent=1 // pred_region
      _
    $region25: #{timm_fr_wrapper_v2_forward.1} parent=1 // pred_fallthru
      _
    // Predicated region
    $region26: #{timm_fr_wrapper_v2_forward.1} parent=1 // pred_check
      _
    $region27: #{timm_fr_wrapper_v2_forward.1} parent=1 // pred_check_branch
      %27 = sbr.rel (0) target = $region29
    $region28: #{timm_fr_wrapper_v2_forward.1} parent=1 // pred_region
      _
    $region29: #{timm_fr_wrapper_v2_forward.1} parent=1 // pred_fallthru
      _
    // Predicated region
    $region30: #{timm_fr_wrapper_v2_forward.1} parent=1 // pred_check
      _
    $region31: #{timm_fr_wrapper_v2_forward.1} parent=1 // pred_check_branch
      %29 = sbr.rel (0) target = $region33
    $region32: #{timm_fr_wrapper_v2_forward.1} parent=1 // pred_region
      _
    $region33: #{timm_fr_wrapper_v2_forward.1} parent=1 // pred_fallthru
      _
    %v31 = vld [vmem:[%s2] sm:$0x3f]
    %v32 = vld [vmem:[%s0] sm:$0xf]
    %v33 = vld [vmem:[%s0 + $0x4] sm:$0xf]
    %v34 = vld [vmem:[%s0 + $0x8] sm:$0xf]
    %v35 = vld [vmem:[%s0 + $0xc] sm:$0xf]
    %v36 = vld [vmem:[%s1] sm:$0xf]
    %v37 = vld [vmem:[%s1 + $0x4] sm:$0xf]
    %v38 = vld [vmem:[%s1 + $0x8] sm:$0xf]
    %v39 = vld [vmem:[%s1 + $0xc] sm:$0xf]
    %v40 = vld [vmem:[%s1 + $0x10] sm:$0xf]
    %v41 = vld [vmem:[%s1 + $0x14] sm:$0xf]
    %v42 = vld [vmem:[%s1 + $0x18] sm:$0xf]
    %v43 = vld [vmem:[%s1 + $0x1c] sm:$0xf]
    %v44 = vperm.slane %v31, 0
    %v49 = vunpack.c.l.b16 %v32
    %v50 = vunpack.c.l.b16 %v33
    %v51 = vunpack.c.l.b16 %v34
    %v52 = vunpack.c.l.b16 %v35
    %v53 = vpack.c.b16 %v50, %v49
    %v54 = vpack.c.b16 %v52, %v51
    %v63 = vunpack.c.l.b16 %v36
    %v64 = vunpack.c.l.b16 %v37
    %v65 = vunpack.c.l.b16 %v38
    %v66 = vunpack.c.l.b16 %v39
    %v67 = vunpack.c.l.b16 %v40
    %v68 = vunpack.c.l.b16 %v41
    %v69 = vunpack.c.l.b16 %v42
    %v70 = vunpack.c.l.b16 %v43
    %v71 = vpack.c.b16 %v64, %v63
    %v72 = vpack.c.b16 %v66, %v65
    %v73 = vpack.c.b16 %v68, %v67
    %v74 = vpack.c.b16 %v70, %v69
    %vm79 = vcmask 523264
    %v81 = vsel %vm79, %v53, 0
    %v84 = vsel %vm79, %v54, 0
    %86 = vmatpush.bf16.msra.mxu0 0
    %87 = vmatpush.bf16.msra.mxu0 0
    %88 = vmatpush.bf16.msra.mxu0 0
    %89 = vmatpush.bf16.msra.mxu0 0
    %90 = vmatpush.bf16.msra.mxu0 %v74
    %91 = vmatpush.bf16.msra.mxu0 %v73
    %92 = vmatpush.bf16.msra.mxu0 %v72
    %93 = vmatpush.bf16.msra.mxu0 %v71
    %94 = vmatmul.bf16.gmra.mxu0 %v81
    %v95 = vpop.f32.mrf.mxu0
    %v96 = vadd.f32 %v44, %v95
    %v97 = vpop.f32.mrf.mxu0
    %v98 = vadd.f32 %v44, %v97
    %99 = vmatmul.bf16.gmra.mxu0 %v84
    %v100 = vpop.f32.mrf.mxu0
    %v101 = vadd.f32 %v44, %v100
    %v102 = vpop.f32.mrf.mxu0
    %v103 = vadd.f32 %v44, %v102
    %104 = vdwg.mxu0
    %vm105 = vcmask 261120
    %v106 = vsel %vm105, %v96, 0.0
    %107 = vadd.xlane.f32.xlu0 %v106
    %v108 = vpop.xlane.xlu0 %107
    %v109 = vsel %vm105, %v98, 0.0
    %110 = vadd.xlane.f32.xlu0 %v109
    %v111 = vpop.xlane.xlu0 %110
    %v112 = vsel %vm105, %v101, 0.0
    %113 = vadd.xlane.f32.xlu0 %v112
    %v114 = vpop.xlane.xlu0 %113
    %v115 = vsel %vm105, %v103, 0.0
    %116 = vadd.xlane.f32.xlu0 %v115
    %v117 = vpop.xlane.xlu0 %116
    %v118 = vrcp.pop 32.0
    %v119 = vmul.f32 32.0, %v118
    %v120 = vsub.f32 1.0, %v119
    %v121 = vmul.f32 %v118, %v120
    %v122 = vadd.f32 %v118, %v121
    %vm123 = vweird.f32 %v118
    %v124 = vsel %vm123, %v118, %v122
    %v125 = vmul.f32 %v108, %v124
    %v126 = vmul.f32 %v111, %v124
    %v127 = vmul.f32 %v114, %v124
    %v128 = vmul.f32 %v117, %v124
    %v129 = vmul.f32 %v96, %v96
    %v130 = vmul.f32 %v98, %v98
    %v131 = vmul.f32 %v101, %v101
    %v132 = vmul.f32 %v103, %v103
    %v133 = vsel %vm105, %v129, 0.0
    %134 = vadd.xlane.f32.xlu0 %v133
    %v135 = vpop.xlane.xlu0 %134
    %v136 = vsel %vm105, %v130, 0.0
    %137 = vadd.xlane.f32.xlu0 %v136
    %v138 = vpop.xlane.xlu0 %137
    %v139 = vsel %vm105, %v131, 0.0
    %140 = vadd.xlane.f32.xlu0 %v139
    %v141 = vpop.xlane.xlu0 %140
    %v142 = vsel %vm105, %v132, 0.0
    %143 = vadd.xlane.f32.xlu0 %v142
    %v144 = vpop.xlane.xlu0 %143
    %v145 = vmul.f32 %v135, %v124
    %v146 = vmul.f32 %v138, %v124
    %v147 = vmul.f32 %v141, %v124
    %v148 = vmul.f32 %v144, %v124
    %v149 = vmul.f32 %v125, %v125
    %v150 = vmul.f32 %v126, %v126
    %v151 = vmul.f32 %v127, %v127
    %v152 = vmul.f32 %v128, %v128
    %v153 = vsub.f32 %v145, %v149
    %v154 = vsub.f32 %v146, %v150
    %v155 = vsub.f32 %v147, %v151
    %v156 = vsub.f32 %v148, %v152
    %v157 = vsub.f32 %v96, %v125
    %v158 = vsub.f32 %v98, %v126
    %v159 = vsub.f32 %v101, %v127
    %v160 = vsub.f32 %v103, %v128
    %v161 = vadd.f32 %v153, 1e-06
    %v162 = vadd.f32 %v154, 1e-06
    %v163 = vadd.f32 %v155, 1e-06
    %v164 = vadd.f32 %v156, 1e-06
    %v165 = vrsqrt.pop %v161
    %v166 = vmul.f32 %v165, %v161
    %v167 = vmul.f32 %v166, %v165
    %v168 = vmul.f32 0.5, %v167
    %v169 = vsub.f32 1.5, %v168
    %v170 = vmul.f32 %v165, %v169
    %vm171 = vweird.f32 %v161
    %vm172 = vweird.f32 %v165
    %vm173 = vmor %vm171, %vm172
    %v174 = vsel %vm173, %v165, %v170
    %v175 = vrsqrt.pop %v162
    %v176 = vmul.f32 %v175, %v162
    %v177 = vmul.f32 %v176, %v175
    %v178 = vmul.f32 0.5, %v177
    %v179 = vsub.f32 1.5, %v178
    %v180 = vmul.f32 %v175, %v179
    %vm181 = vweird.f32 %v162
    %vm182 = vweird.f32 %v175
    %vm183 = vmor %vm181, %vm182
    %v184 = vsel %vm183, %v175, %v180
    %v185 = vrsqrt.pop %v163
    %v186 = vmul.f32 %v185, %v163
    %v187 = vmul.f32 %v186, %v185
    %v188 = vmul.f32 0.5, %v187
    %v189 = vsub.f32 1.5, %v188
    %v190 = vmul.f32 %v185, %v189
    %vm191 = vweird.f32 %v163
    %vm192 = vweird.f32 %v185
    %vm193 = vmor %vm191, %vm192
    %v194 = vsel %vm193, %v185, %v190
    %v195 = vrsqrt.pop %v164
    %v196 = vmul.f32 %v195, %v164
    %v197 = vmul.f32 %v196, %v195
    %v198 = vmul.f32 0.5, %v197
    %v199 = vsub.f32 1.5, %v198
    %v200 = vmul.f32 %v195, %v199
    %vm201 = vweird.f32 %v164
    %vm202 = vweird.f32 %v195
    %vm203 = vmor %vm201, %vm202
    %v204 = vsel %vm203, %v195, %v200
    %v205 = vmul.f32 %v157, %v174
    %v206 = vmul.f32 %v158, %v184
    %v207 = vmul.f32 %v159, %v194
    %v208 = vmul.f32 %v160, %v204
    %v209 = vperm.slane %v31, 1
    %v210 = vmul.f32 %v205, %v209
    %v211 = vmul.f32 %v206, %v209
    %v212 = vmul.f32 %v207, %v209
    %v213 = vmul.f32 %v208, %v209
    %v214 = vperm.slane %v31, 2
    %v215 = vadd.f32 %v210, %v214
    %v216 = vadd.f32 %v211, %v214
    %v217 = vadd.f32 %v212, %v214
    %v218 = vadd.f32 %v213, %v214
    %v219 = vpack.c.bf16 %v216, %v215
    %v220 = vpack.c.bf16 %v218, %v217
    %v221 = vld [vmem:[%s3] sm:$0xf]
    %v222 = vld [vmem:[%s3 + $0x4] sm:$0xf]
    %v223 = vld [vmem:[%s3 + $0x8] sm:$0xf]
    %v224 = vld [vmem:[%s3 + $0xc] sm:$0xf]
    %v225 = vld [vmem:[%s4] sm:$0x1]
    %v227 = vperm.slane %v225, 0
    %v233 = vunpack.c.l.b16 %v221
    %v234 = vunpack.c.l.b16 %v222
    %v235 = vunpack.c.l.b16 %v223
    %v236 = vunpack.c.l.b16 %v224
    %v237 = vpack.c.b16 %v234, %v233
    %v238 = vpack.c.b16 %v236, %v235
    %v242 = vsel %vm105, %v219, 0
    %v245 = vsel %vm105, %v220, 0
    %247 = vmatpush.bf16.msra.mxu0 0
    %248 = vmatpush.bf16.msra.mxu0 0
    %249 = vmatpush.bf16.msra.mxu0 0
    %250 = vmatpush.bf16.msra.mxu0 0
    %251 = vmatpush.bf16.msra.mxu0 0
    %252 = vmatpush.bf16.msra.mxu0 0
    %253 = vmatpush.bf16.msra.mxu0 %v238
    %254 = vmatpush.bf16.msra.mxu0 %v237
    %255 = vmatmul.bf16.gmra.mxu0 %v242
    %v256 = vpop.f32.mrf.mxu0
    %v257 = vadd.f32 %v227, %v256
    %v258 = vpop.f32.mrf.mxu0
    %v259 = vadd.f32 %v227, %v258
    %260 = vmatmul.bf16.gmra.mxu0 %v245
    %v261 = vpop.f32.mrf.mxu0
    %v262 = vadd.f32 %v227, %v261
    %v263 = vpop.f32.mrf.mxu0
    %v264 = vadd.f32 %v227, %v263
    %265 = vdwg.mxu0
    %v266 = vmul.f32 %v257, %v257
    %v267 = vmul.f32 %v259, %v259
    %v268 = vmul.f32 %v262, %v262
    %v269 = vmul.f32 %v264, %v264
    %v270 = vmul.f32 %v257, %v266
    %v271 = vmul.f32 %v259, %v267
    %v272 = vmul.f32 %v262, %v268
    %v273 = vmul.f32 %v264, %v269
    %v274 = vmul.f32 %v270, 0.044715
    %v275 = vmul.f32 %v271, 0.044715
    %v276 = vmul.f32 %v272, 0.044715
    %v277 = vmul.f32 %v273, 0.044715
    %v278 = vadd.f32 %v257, %v274
    %v279 = vadd.f32 %v259, %v275
    %v280 = vadd.f32 %v262, %v276
    %v281 = vadd.f32 %v264, %v277
    %v282 = vmul.f32 %v278, 0.7978846
    %v283 = vmul.f32 %v279, 0.7978846
    %v284 = vmul.f32 %v280, 0.7978846
    %v285 = vmul.f32 %v281, 0.7978846
    %v286 = vtanh.pop %v282
    %v287 = vtanh.pop %v283
    %v288 = vtanh.pop %v284
    %v289 = vtanh.pop %v285
    %v290 = vadd.f32 %v286, 1.0
    %v291 = vadd.f32 %v287, 1.0
    %v292 = vadd.f32 %v288, 1.0
    %v293 = vadd.f32 %v289, 1.0
    %v294 = vmul.f32 %v290, 0.5
    %v295 = vmul.f32 %v291, 0.5
    %v296 = vmul.f32 %v292, 0.5
    %v297 = vmul.f32 %v293, 0.5
    %v298 = vmul.f32 %v257, %v294
    %v299 = vmul.f32 %v259, %v295
    %v300 = vmul.f32 %v262, %v296
    %v301 = vmul.f32 %v264, %v297
    %v302 = vpack.c.bf16 %v299, %v298
    %v303 = vpack.c.bf16 %v301, %v300
    %v304 = vld [vmem:[%s5] sm:$0xf]
    %v305 = vld [vmem:[%s5 + $0x4] sm:$0xf]
    %v306 = vld [vmem:[%s5 + $0x8] sm:$0xf]
    %v307 = vld [vmem:[%s5 + $0xc] sm:$0xf]
    %v308 = vld [vmem:[%s5 + $0x10] sm:$0xf]
    %v309 = vld [vmem:[%s5 + $0x14] sm:$0xf]
    %v310 = vld [vmem:[%s5 + $0x18] sm:$0xf]
    %v311 = vld [vmem:[%s5 + $0x1c] sm:$0xf]
    %v312 = vld [vmem:[%s5 + $0x20] sm:$0xf]
    %v313 = vld [vmem:[%s5 + $0x24] sm:$0xf]
    %v314 = vld [vmem:[%s5 + $0x28] sm:$0xf]
    %v315 = vld [vmem:[%s5 + $0x2c] sm:$0xf]
    %v316 = vld [vmem:[%s5 + $0x30] sm:$0xf]
    %v317 = vld [vmem:[%s5 + $0x34] sm:$0xf]
    %v318 = vld [vmem:[%s5 + $0x38] sm:$0xf]
    %v319 = vld [vmem:[%s5 + $0x3c] sm:$0xf]
    %v320 = vperm.slane %v31, 3
    %v337 = vunpack.c.l.b16 %v304
    %v338 = vunpack.c.l.b16 %v305
    %v339 = vunpack.c.l.b16 %v306
    %v340 = vunpack.c.l.b16 %v307
    %v341 = vunpack.c.l.b16 %v308
    %v342 = vunpack.c.l.b16 %v309
    %v343 = vunpack.c.l.b16 %v310
    %v344 = vunpack.c.l.b16 %v311
    %v345 = vunpack.c.l.b16 %v312
    %v346 = vunpack.c.l.b16 %v313
    %v347 = vunpack.c.l.b16 %v314
    %v348 = vunpack.c.l.b16 %v315
    %v349 = vunpack.c.l.b16 %v316
    %v350 = vunpack.c.l.b16 %v317
    %v351 = vunpack.c.l.b16 %v318
    %v352 = vunpack.c.l.b16 %v319
    %v353 = vpack.c.b16 %v338, %v337
    %v354 = vpack.c.b16 %v340, %v339
    %v355 = vpack.c.b16 %v342, %v341
    %v356 = vpack.c.b16 %v344, %v343
    %v357 = vpack.c.b16 %v346, %v345
    %v358 = vpack.c.b16 %v348, %v347
    %v359 = vpack.c.b16 %v350, %v349
    %v360 = vpack.c.b16 %v352, %v351
    %369 = vmatpush.bf16.msra.mxu0 %v360
    %370 = vmatpush.bf16.msra.mxu0 %v359
    %371 = vmatpush.bf16.msra.mxu0 %v358
    %372 = vmatpush.bf16.msra.mxu0 %v357
    %373 = vmatpush.bf16.msra.mxu0 %v356
    %374 = vmatpush.bf16.msra.mxu0 %v355
    %375 = vmatpush.bf16.msra.mxu0 %v354
    %376 = vmatpush.bf16.msra.mxu0 %v353
    %377 = vmatmul.bf16.gmra.mxu0 %v302
    %v378 = vpop.f32.mrf.mxu0
    %v379 = vadd.f32 %v320, %v378
    %v380 = vpop.f32.mrf.mxu0
    %v381 = vadd.f32 %v320, %v380
    %382 = vmatmul.bf16.gmra.mxu0 %v303
    %v383 = vpop.f32.mrf.mxu0
    %v384 = vadd.f32 %v320, %v383
    %v385 = vpop.f32.mrf.mxu0
    %v386 = vadd.f32 %v320, %v385
    %387 = vdwg.mxu0
    %v388 = vadd.f32 %v96, %v379
    %v389 = vadd.f32 %v98, %v381
    %v390 = vadd.f32 %v101, %v384
    %v391 = vadd.f32 %v103, %v386
    %v392 = vlaneseq
    %v393 = vshrl.u32 %v392, 7
    %v394 = vlaneseq
    %v395 = vand.u32 %v394, 127
    %v396 = vmul.u32 %v393, 16
    %vm397 = vcmp.ge.s32.totalorder %v395, %v396
    %v398 = vadd.s32 %v396, 16
    %vm399 = vcmp.lt.s32.totalorder %v395, %v398
    %vm400 = vmand %vm397, %vm399
    %v401 = vsel %vm400, 0.0625, 0.0
    %v403 = vsel %vm105, %v401, 0
    %405 = vmatpush.msra.mxu0 0.0
    %406 = vmatpush.msra.mxu0 0.0
    %407 = vmatpush.msra.mxu0 0.0
    %408 = vmatpush.msra.mxu0 0.0
    %409 = vmatpush.msra.mxu0 0.0
    %410 = vmatpush.msra.mxu0 0.0
    %411 = vmatpush.msra.mxu0 0.0
    %412 = vmatpush.msra.mxu0 0.0
    %413 = vmatpush.msra.mxu0 0.0
    %414 = vmatpush.msra.mxu0 0.0
    %415 = vmatpush.msra.mxu0 0.0
    %416 = vmatpush.msra.mxu0 0.0
    %417 = vmatpush.msra.mxu0 %v391
    %418 = vmatpush.msra.mxu0 %v390
    %419 = vmatpush.msra.mxu0 %v389
    %420 = vmatpush.msra.mxu0 %v388
    %421 = vmatmul.f32.gmra.mxu0 %v403
    %v422 = vpop.f32.mrf.mxu0
    %v423 = vadd.f32 0.0, %v422
    %424 = vdwg.mxu0
    %vm425 = vcmask 254976
    %v426 = vsel %vm425, %v423, 0.0
    %427 = vadd.xlane.f32.xlu0 %v426
    %v428 = vpop.xlane.xlu0 %427
    %v429 = vmul.f32 %v428, %v124
    %v430 = vmul.f32 %v423, %v423
    %v431 = vsel %vm425, %v430, 0.0
    %432 = vadd.xlane.f32.xlu0 %v431
    %v433 = vpop.xlane.xlu0 %432
    %v434 = vmul.f32 %v433, %v124
    %v435 = vsub.f32 %v423, %v429
    %v436 = vmul.f32 %v429, %v429
    %v437 = vsub.f32 %v434, %v436
    %v438 = vadd.f32 %v437, 1e-06
    %v439 = vrsqrt.pop %v438
    %v440 = vmul.f32 %v439, %v438
    %v441 = vmul.f32 %v440, %v439
    %v442 = vmul.f32 0.5, %v441
    %v443 = vsub.f32 1.5, %v442
    %v444 = vmul.f32 %v439, %v443
    %vm445 = vweird.f32 %v438
    %vm446 = vweird.f32 %v439
    %vm447 = vmor %vm445, %vm446
    %v448 = vsel %vm447, %v439, %v444
    %v449 = vmul.f32 %v435, %v448
    %v450 = vperm.slane %v31, 4
    %v451 = vmul.f32 %v449, %v450
    %v452 = vperm.slane %v31, 5
    %v453 = vadd.f32 %v451, %v452
    %v454 = vld [vmem:[%s6] sm:$0xff]
    %v455 = vld [vmem:[%s6 + $0x8] sm:$0xff]
    %v456 = vld [vmem:[%s6 + $0x10] sm:$0xff]
    %v457 = vld [vmem:[%s6 + $0x18] sm:$0xff]
    %v458 = vld [vmem:[%s6 + $0x20] sm:$0xff]
    %v459 = vld [vmem:[%s6 + $0x28] sm:$0xff]
    %v460 = vld [vmem:[%s6 + $0x30] sm:$0xff]
    %v461 = vld [vmem:[%s6 + $0x38] sm:$0xff]
    %v462 = vld [vmem:[%s6 + $0x40] sm:$0xff]
    %v463 = vld [vmem:[%s6 + $0x48] sm:$0xff]
    %v464 = vld [vmem:[%s6 + $0x50] sm:$0xff]
    %v465 = vld [vmem:[%s6 + $0x58] sm:$0xff]
    %v466 = vld [vmem:[%s6 + $0x60] sm:$0xff]
    %v467 = vld [vmem:[%s6 + $0x68] sm:$0xff]
    %v468 = vld [vmem:[%s6 + $0x70] sm:$0xff]
    %v469 = vld [vmem:[%s6 + $0x78] sm:$0xff]
    %v470 = vld [vmem:[%s7] sm:$0xf]
    %v472 = vperm.slane %v470, 0
    %v473 = vperm.slane %v470, 1
    %v474 = vperm.slane %v470, 2
    %v475 = vperm.slane %v470, 3
    %v481 = vsel %vm105, %v453, 0
    %483 = vmatpush.msra.mxu0 0.0
    %484 = vmatpush.msra.mxu0 0.0
    %485 = vmatpush.msra.mxu0 0.0
    %486 = vmatpush.msra.mxu0 0.0
    %487 = vmatpush.msra.mxu0 0.0
    %488 = vmatpush.msra.mxu0 0.0
    %489 = vmatpush.msra.mxu0 0.0
    %490 = vmatpush.msra.mxu0 0.0
    %491 = vmatpush.msra.mxu0 0.0
    %492 = vmatpush.msra.mxu0 0.0
    %493 = vmatpush.msra.mxu0 0.0
    %494 = vmatpush.msra.mxu0 0.0
    %495 = vmatpush.msra.mxu0 %v466
    %496 = vmatpush.msra.mxu0 %v462
    %497 = vmatpush.msra.mxu0 %v458
    %498 = vmatpush.msra.mxu0 %v454
    %499 = vmatmul.f32.gmra.mxu0 %v481
    %v500 = vpop.f32.mrf.mxu0
    %v501 = vadd.f32 %v472, %v500
    %502 = vdwg.mxu0
    %503 = vmatpush.msra.mxu0 0.0
    %504 = vmatpush.msra.mxu0 0.0
    %505 = vmatpush.msra.mxu0 0.0
    %506 = vmatpush.msra.mxu0 0.0
    %507 = vmatpush.msra.mxu0 0.0
    %508 = vmatpush.msra.mxu0 0.0
    %509 = vmatpush.msra.mxu0 0.0
    %510 = vmatpush.msra.mxu0 0.0
    %511 = vmatpush.msra.mxu0 0.0
    %512 = vmatpush.msra.mxu0 0.0
    %513 = vmatpush.msra.mxu0 0.0
    %514 = vmatpush.msra.mxu0 0.0
    %515 = vmatpush.msra.mxu0 %v467
    %516 = vmatpush.msra.mxu0 %v463
    %517 = vmatpush.msra.mxu0 %v459
    %518 = vmatpush.msra.mxu0 %v455
    %519 = vmatmul.f32.gmra.mxu0 %v481
    %v520 = vpop.f32.mrf.mxu0
    %v521 = vadd.f32 %v473, %v520
    %522 = vdwg.mxu0
    %523 = vmatpush.msra.mxu0 0.0
    %524 = vmatpush.msra.mxu0 0.0
    %525 = vmatpush.msra.mxu0 0.0
    %526 = vmatpush.msra.mxu0 0.0
    %527 = vmatpush.msra.mxu0 0.0
    %528 = vmatpush.msra.mxu0 0.0
    %529 = vmatpush.msra.mxu0 0.0
    %530 = vmatpush.msra.mxu0 0.0
    %531 = vmatpush.msra.mxu0 0.0
    %532 = vmatpush.msra.mxu0 0.0
    %533 = vmatpush.msra.mxu0 0.0
    %534 = vmatpush.msra.mxu0 0.0
    %535 = vmatpush.msra.mxu0 %v468
    %536 = vmatpush.msra.mxu0 %v464
    %537 = vmatpush.msra.mxu0 %v460
    %538 = vmatpush.msra.mxu0 %v456
    %539 = vmatmul.f32.gmra.mxu0 %v481
    %v540 = vpop.f32.mrf.mxu0
    %v541 = vadd.f32 %v474, %v540
    %542 = vdwg.mxu0
    %543 = vmatpush.msra.mxu0 0.0
    %544 = vmatpush.msra.mxu0 0.0
    %545 = vmatpush.msra.mxu0 0.0
    %546 = vmatpush.msra.mxu0 0.0
    %547 = vmatpush.msra.mxu0 0.0
    %548 = vmatpush.msra.mxu0 0.0
    %549 = vmatpush.msra.mxu0 0.0
    %550 = vmatpush.msra.mxu0 0.0
    %551 = vmatpush.msra.mxu0 0.0
    %552 = vmatpush.msra.mxu0 0.0
    %553 = vmatpush.msra.mxu0 0.0
    %554 = vmatpush.msra.mxu0 0.0
    %555 = vmatpush.msra.mxu0 %v469
    %556 = vmatpush.msra.mxu0 %v465
    %557 = vmatpush.msra.mxu0 %v461
    %558 = vmatpush.msra.mxu0 %v457
    %559 = vmatmul.f32.gmra.mxu0 %v481
    %v560 = vpop.f32.mrf.mxu0
    %v561 = vadd.f32 %v475, %v560
    %562 = vdwg.mxu0
    %v567 = vrot.slane %v521, 6
    %v568 = vrot.slane %v541, 4
    %v569 = vrot.slane %v561, 2
    %vm570 = vcmask 1041408
    %v571 = vsel %vm570, %v501, %v567
    %vm572 = vcmask 1045508
    %v573 = vsel %vm572, %v568, %v569
    %vm574 = vcmask 1043456
    %v575 = vsel %vm574, %v571, %v573
    %577 = vst [vmem:[#allocation2] sm:$0xff] %v575
    // Predicated region
    $region34: #{timm_fr_wrapper_v2_forward.1} parent=1 // pred_check
      _
    $region35: #{timm_fr_wrapper_v2_forward.1} parent=1 // pred_check_branch
      %579 = sbr.rel (0) target = $region37
    $region36: #{timm_fr_wrapper_v2_forward.1} parent=1 // pred_region
      %581 = vsyncadd [#allocation3], 0
      %s583 = sshll.u32 [#allocation2], 4
      %s584 = int_to_ptr.vmem [resolvable:$true] %s583
      %s585 = sshll.u32 %s8, 4
      %s586 = int_to_ptr.hbm [resolvable:$true] %s585
      %588 = dma.vmem_to_hbm [thread:$0]  %s584, 128, %s586, [#allocation3]
    $region37: #{timm_fr_wrapper_v2_forward.1} parent=1 // pred_fallthru
      _
    // Predicated region
    $region38: #{timm_fr_wrapper_v2_forward.1} parent=1 // pred_check
      _
    $region39: #{timm_fr_wrapper_v2_forward.1} parent=1 // pred_check_branch
      %590 = sbr.rel (0) target = $region41
    $region40: #{timm_fr_wrapper_v2_forward.1} parent=1 // pred_region
      %592 = dma.done [#allocation3], 128
    $region41: #{timm_fr_wrapper_v2_forward.1} parent=1 // pred_fallthru
      _
    %593 = vsyncpa [#allocation3], 1

</llo_original>
